<compile_context>
chip_gen: v7x
topology: tpu7x:2x2x1
jax: 0.10.0
libtpu: 0.0.40
codegen_flags: <defaults>
</compile_context>

<pallas_src>
import jax
import jax.numpy as jnp
from jax.experimental import pallas as pl
from jax.experimental.pallas import tpu as pltpu


def _ffn_kernel(x_ref, w1_ref, b1_ref, w2_ref, b2_ref, o_ref, acc_ref):
    h = pl.program_id(1)
    last_h = pl.num_programs(1) - 1

    # First linear, partial along the hidden axis (this h-tile). bf16 inputs,
    # f32 accumulation on the MXU.
    z = jnp.dot(x_ref[...], w1_ref[...], preferred_element_type=jnp.float32)
    z = z + b1_ref[...]

    # GELU (tanh approximation), in f32, fused right after the first matmul.
    c = 0.7978845608028654  # sqrt(2/pi)
    g = 0.5 * z * (1.0 + jnp.tanh(c * z * (1.0 + 0.044715 * z * z)))

    # Second linear: this hidden tile's contribution to (tm, emb) output.
    contrib = jnp.dot(
        g.astype(w2_ref.dtype), w2_ref[...], preferred_element_type=jnp.float32
    )

    @pl.when(h == 0)
    def _first():
        acc_ref[...] = contrib  # write directly; no zero-fill + add

    @pl.when(h > 0)
    def _rest():
        acc_ref[...] += contrib

    @pl.when(h == last_h)
    def _finalize():
        o_ref[...] = (acc_ref[...] + b2_ref[...]).astype(o_ref.dtype)


def _round_up(x, m):
    return ((x + m - 1) // m) * m


def _shrink_tm(tm):
    return max(8, (tm // 2) // 8 * 8)


def feedforward_pallas(x, w1, b1, w2, b2, *, compute_dtype=jnp.bfloat16):
    """x: (..., emb); w1: (emb, H); b1: (H,); w2: (H, emb); b2: (emb,)."""
    orig_shape = x.shape
    out_dtype = x.dtype
    emb = orig_shape[-1]
    rows = 1
    for d in orig_shape[:-1]:
        rows *= d

    hidden = w1.shape[1]
    assert w1.shape == (emb, hidden)
    assert b1.shape == (hidden,)
    assert w2.shape == (hidden, emb)
    assert b2.shape == (emb,)

    bytes_c = jnp.dtype(compute_dtype).itemsize
    out_bytes = jnp.dtype(out_dtype).itemsize

    # ---- generation-aware VMEM budget --------------------------------------
    try:
        vmem_cap = int(pltpu.get_tpu_info().vmem_capacity_bytes)
    except Exception:
        vmem_cap = 64 * 1024 * 1024  # conservative (v7x per-TensorCore)
    vmem_limit = min(int(vmem_cap * 0.9), 128 * 1024 * 1024)
    budget = int(vmem_limit * 0.75)

    def vmem_usage(tm, th):
        # Double-buffered input/output blocks + persistent f32 accumulator.
        return (
            2 * tm * emb * bytes_c          # x row tile
            + 2 * emb * th * bytes_c        # W1 column tile
            + 2 * th * emb * bytes_c        # W2 row tile
            + 2 * 8 * th * 4                # b1 tile (sublane-padded)
            + 2 * 8 * emb * 4               # b2 (sublane-padded)
            + 2 * tm * emb * out_bytes      # out tile
            + tm * emb * 4                  # f32 accumulator
        )

    # ---- row tiling: pad rows up instead of shrinking tm --------------------
    tm = min(256, _round_up(rows, 8))
    # Keep at least 2 row tiles so the "parallel" axis splits across v7x cores.
    if rows > 8 and _round_up(rows, tm) // tm < 2:
        tm = _round_up((rows + 1) // 2, 8)

    # ---- hidden (reduction) tiling ------------------------------------------
    if hidden <= 128:
        th = hidden
        padded_hidden = hidden
        while vmem_usage(tm, th) > budget and tm > 8:
            tm = _shrink_tm(tm)
    else:
        padded_hidden = _round_up(hidden, 128)
        cands = [c for c in (1024, 512, 256, 128) if padded_hidden % c == 0]
        th = None
        while th is None:
            for c in cands:
                if vmem_usage(tm, c) <= budget:
                    th = c
                    break
            if th is None:
                if tm > 8:
                    tm = _shrink_tm(tm)
                else:
                    # TODO(synk): tile the emb axis of the second matmul when
                    # even (8, emb) f32 slabs overflow VMEM (very large emb).
                    th = cands[-1]

    padded_rows = _round_up(rows, tm)

    # ---- prepare (cast / pad) operands --------------------------------------
    x2 = x.reshape(rows, emb).astype(compute_dtype)
    if padded_rows != rows:
        x2 = jnp.pad(x2, ((0, padded_rows - rows), (0, 0)))

    w1c = w1.astype(compute_dtype)
    w2c = w2.astype(compute_dtype)
    b1f = b1.astype(jnp.float32)
    if padded_hidden != hidden:
        hp = padded_hidden - hidden
        w1c = jnp.pad(w1c, ((0, 0), (0, hp)))
        b1f = jnp.pad(b1f, ((0, hp),))
        w2c = jnp.pad(w2c, ((0, hp), (0, 0)))
    b1f = b1f.reshape(1, padded_hidden)
    b2f = b2.astype(jnp.float32).reshape(1, emb)

    grid = (padded_rows // tm, padded_hidden // th)
    n_row_tiles = grid[0]

    cost = pl.CostEstimate(
        flops=4 * rows * emb * hidden,
        transcendentals=rows * hidden,
        bytes_accessed=(
            rows * emb * (bytes_c + out_bytes)
            + n_row_tiles * 2 * emb * hidden * bytes_c
            + 4 * (hidden + emb)
        ),
    )

    out = pl.pallas_call(
        _ffn_kernel,
        out_shape=jax.ShapeDtypeStruct((padded_rows, emb), out_dtype),
        grid_spec=pltpu.PrefetchScalarGridSpec(
            num_scalar_prefetch=0,
            grid=grid,
            in_specs=[
                pl.BlockSpec((tm, emb), lambda i, h: (i, 0)),    # x row tile
                pl.BlockSpec((emb, th), lambda i, h: (0, h)),    # W1 col tile
                pl.BlockSpec((1, th), lambda i, h: (0, h)),      # b1 tile
                pl.BlockSpec((th, emb), lambda i, h: (h, 0)),    # W2 row tile
                pl.BlockSpec((1, emb), lambda i, h: (0, 0)),     # b2 (full)
            ],
            out_specs=pl.BlockSpec((tm, emb), lambda i, h: (i, 0)),
            scratch_shapes=[pltpu.VMEM((tm, emb), jnp.float32)],
        ),
        compiler_params=pltpu.CompilerParams(
            dimension_semantics=("parallel", "arbitrary"),
            vmem_limit_bytes=vmem_limit,
        ),
        cost_estimate=cost,
    )(x2, w1c, b1f, w2c, b2f)

    if padded_rows != rows:
        out = out[:rows]
    return out.reshape(orig_shape)


def feedforward_ref(x, w1, b1, w2, b2):
    xf = x.astype(jnp.float32)
    h = xf @ w1.astype(jnp.float32) + b1.astype(jnp.float32)
    c = jnp.sqrt(2.0 / jnp.pi)
    g = 0.5 * h * (1.0 + jnp.tanh(c * (h + 0.044715 * h**3)))
    out = g @ w2.astype(jnp.float32) + b2.astype(jnp.float32)
    return out.astype(x.dtype)


if __name__ == "__main__":
    key = jax.random.PRNGKey(0)
    batch, seq, emb_dim = 2, 8, 32
    hidden_dim = 4 * emb_dim

    k_x, k_w1, k_b1, k_w2, k_b2 = jax.random.split(key, 5)
    x = jax.random.normal(k_x, (batch, seq, emb_dim), dtype=jnp.float32)
    w1 = jax.random.normal(k_w1, (emb_dim, hidden_dim), dtype=jnp.float32) * 0.05
    b1 = jax.random.normal(k_b1, (hidden_dim,), dtype=jnp.float32) * 0.05
    w2 = jax.random.normal(k_w2, (hidden_dim, emb_dim), dtype=jnp.float32) * 0.05
    b2 = jax.random.normal(k_b2, (emb_dim,), dtype=jnp.float32) * 0.05

    # Default (perf) path: bf16 MXU compute, f32 accumulation.
    y = feedforward_pallas(x, w1, b1, w2, b2)
    # Full-f32 compute path for a tight numerical check of the kernel logic.
    y_f32 = feedforward_pallas(x, w1, b1, w2, b2, compute_dtype=jnp.float32)
    jax.block_until_ready((y, y_f32))

    y_ref = feedforward_ref(x, w1, b1, w2, b2)
    assert y.shape == x.shape and y.dtype == x.dtype
    assert jnp.allclose(y_f32, y_ref, atol=1e-4, rtol=1e-4)
    assert jnp.allclose(y, y_ref, atol=2e-2, rtol=2e-2)  # bf16 MXU tolerance

    print("KERNEL_OK")
</pallas_src>

<mosaic_0001>
module attributes {stable_mosaic.version = 11 : i64} {
  func.func @_ffn_kernel(%arg0: i32, %arg1: i32, %arg2: memref<8x32xbf16, #tpu.memory_space<vmem>>, %arg3: memref<32x128xbf16, #tpu.memory_space<vmem>>, %arg4: memref<1x128xf32, #tpu.memory_space<vmem>>, %arg5: memref<128x32xbf16, #tpu.memory_space<vmem>>, %arg6: memref<1x32xf32, #tpu.memory_space<vmem>>, %arg7: memref<8x32xf32, #tpu.memory_space<vmem>>, %arg8: memref<8x32xf32, #tpu.memory_space<vmem>>) attributes {dimension_semantics = [#tpu.dimension_semantics<parallel>, #tpu.dimension_semantics<arbitrary>], iteration_bounds = array<i64: 2, 1>, scalar_prefetch = 0 : i64, scratch_operands = 1 : i64, tpu.core_type = #tpu.core_type<tc>, window_params = [{transform_indices = @transform_0, window_bounds = array<i64: 8, 32>}, {transform_indices = @transform_1, window_bounds = array<i64: 32, 128>}, {transform_indices = @transform_2, window_bounds = array<i64: 1, 128>}, {transform_indices = @transform_3, window_bounds = array<i64: 128, 32>}, {pipeline_mode = #tpu.pipeline_mode<synchronous>, transform_indices = @transform_4, window_bounds = array<i64: 1, 32>}, {transform_indices = @transform_5, window_bounds = array<i64: 8, 32>}]} {
    %c0 = arith.constant 0 : index
    %c0_0 = arith.constant 0 : index
    %0 = vector.load %arg2[%c0, %c0_0] : memref<8x32xbf16, #tpu.memory_space<vmem>>, vector<8x32xbf16>
    %c0_1 = arith.constant 0 : index
    %c0_2 = arith.constant 0 : index
    %1 = vector.load %arg3[%c0_1, %c0_2] : memref<32x128xbf16, #tpu.memory_space<vmem>>, vector<32x128xbf16>
    %cst = arith.constant dense<0.000000e+00> : vector<8x128xf32>
    %2 = tpu.matmul %0, %1, %cst {dimension_numbers = #tpu.dot_dimension_numbers<[1], [0], [0], [1], [0, 0, 1, 1], [], []>} : vector<8x32xbf16>, vector<32x128xbf16>, vector<8x128xf32> -> vector<8x128xf32>
    %c0_3 = arith.constant 0 : index
    %c0_4 = arith.constant 0 : index
    %3 = vector.load %arg4[%c0_3, %c0_4] : memref<1x128xf32, #tpu.memory_space<vmem>>, vector<1x128xf32>
    %4 = vector.broadcast %3 : vector<1x128xf32> to vector<8x128xf32>
    %5 = arith.addf %2, %4 : vector<8x128xf32>
    %cst_5 = arith.constant 5.000000e-01 : f32
    %6 = vector.broadcast %cst_5 : f32 to vector<8x128xf32>
    %7 = arith.mulf %6, %5 : vector<8x128xf32>
    %cst_6 = arith.constant 0.797884583 : f32
    %8 = vector.broadcast %cst_6 : f32 to vector<8x128xf32>
    %9 = arith.mulf %8, %5 : vector<8x128xf32>
    %cst_7 = arith.constant 4.471500e-02 : f32
    %10 = vector.broadcast %cst_7 : f32 to vector<8x128xf32>
    %11 = arith.mulf %10, %5 : vector<8x128xf32>
    %12 = arith.mulf %11, %5 : vector<8x128xf32>
    %cst_8 = arith.constant 1.000000e+00 : f32
    %13 = vector.broadcast %cst_8 : f32 to vector<8x128xf32>
    %14 = arith.addf %13, %12 : vector<8x128xf32>
    %15 = arith.mulf %9, %14 : vector<8x128xf32>
    %16 = math.tanh %15 : vector<8x128xf32>
    %cst_9 = arith.constant 1.000000e+00 : f32
    %17 = vector.broadcast %cst_9 : f32 to vector<8x128xf32>
    %18 = arith.addf %17, %16 : vector<8x128xf32>
    %19 = arith.mulf %7, %18 : vector<8x128xf32>
    %20 = arith.truncf %19 : vector<8x128xf32> to vector<8x128xbf16>
    %c0_10 = arith.constant 0 : index
    %c0_11 = arith.constant 0 : index
    %21 = vector.load %arg5[%c0_10, %c0_11] : memref<128x32xbf16, #tpu.memory_space<vmem>>, vector<128x32xbf16>
    %cst_12 = arith.constant dense<0.000000e+00> : vector<8x32xf32>
    %22 = tpu.matmul %20, %21, %cst_12 {dimension_numbers = #tpu.dot_dimension_numbers<[1], [0], [0], [1], [0, 0, 1, 1], [], []>} : vector<8x128xbf16>, vector<128x32xbf16>, vector<8x32xf32> -> vector<8x32xf32>
    %c0_i32 = arith.constant 0 : i32
    %23 = arith.cmpi eq, %arg1, %c0_i32 : i32
    %24 = arith.extui %23 : i1 to i32
    %c0_i32_13 = arith.constant 0 : i32
    %25 = arith.cmpi ne, %24, %c0_i32_13 : i32
    scf.if %25 {
      %c0_18 = arith.constant 0 : index
      %c0_19 = arith.constant 0 : index
      %32 = vector.load %arg8[%c0_18, %c0_19] : memref<8x32xf32, #tpu.memory_space<vmem>>, vector<8x32xf32>
      tpu.vector_store %arg8[%c0_18, %c0_19], %22 {strides = array<i32>} : memref<8x32xf32, #tpu.memory_space<vmem>>, vector<8x32xf32>,
    } else {
    }
    %c0_i32_14 = arith.constant 0 : i32
    %26 = arith.cmpi sgt, %arg1, %c0_i32_14 : i32
    %27 = arith.extui %26 : i1 to i32
    %c0_i32_15 = arith.constant 0 : i32
    %28 = arith.cmpi ne, %27, %c0_i32_15 : i32
    scf.if %28 {
      %c0_18 = arith.constant 0 : index
      %c0_19 = arith.constant 0 : index
      %32 = vector.load %arg8[%c0_18, %c0_19] : memref<8x32xf32, #tpu.memory_space<vmem>>, vector<8x32xf32>
      %33 = arith.addf %32, %22 : vector<8x32xf32>
      %c0_20 = arith.constant 0 : index
      %c0_21 = arith.constant 0 : index
      %34 = vector.load %arg8[%c0_20, %c0_21] : memref<8x32xf32, #tpu.memory_space<vmem>>, vector<8x32xf32>
      tpu.vector_store %arg8[%c0_20, %c0_21], %33 {strides = array<i32>} : memref<8x32xf32, #tpu.memory_space<vmem>>, vector<8x32xf32>,
    } else {
    }
    %c0_i32_16 = arith.constant 0 : i32
    %29 = arith.cmpi eq, %arg1, %c0_i32_16 : i32
    %30 = arith.extui %29 : i1 to i32
    %c0_i32_17 = arith.constant 0 : i32
    %31 = arith.cmpi ne, %30, %c0_i32_17 : i32
    scf.if %31 {
      %c0_18 = arith.constant 0 : index
      %c0_19 = arith.constant 0 : index
      %32 = vector.load %arg8[%c0_18, %c0_19] : memref<8x32xf32, #tpu.memory_space<vmem>>, vector<8x32xf32>
      %c0_20 = arith.constant 0 : index
      %c0_21 = arith.constant 0 : index
      %33 = vector.load %arg6[%c0_20, %c0_21] : memref<1x32xf32, #tpu.memory_space<vmem>>, vector<1x32xf32>
      %34 = vector.broadcast %33 : vector<1x32xf32> to vector<8x32xf32>
      %35 = arith.addf %32, %34 : vector<8x32xf32>
      %c0_22 = arith.constant 0 : index
      %c0_23 = arith.constant 0 : index
      %36 = vector.load %arg7[%c0_22, %c0_23] : memref<8x32xf32, #tpu.memory_space<vmem>>, vector<8x32xf32>
      tpu.vector_store %arg7[%c0_22, %c0_23], %35 {strides = array<i32>} : memref<8x32xf32, #tpu.memory_space<vmem>>, vector<8x32xf32>,
    } else {
    }
    return
  }
  func.func @transform_0(%arg0: i32, %arg1: i32) -> (i32, i32) {
    %c0_i32 = arith.constant 0 : i32
    %c0_i32_0 = arith.constant 0 : i32
    return %arg0, %c0_i32 : i32, i32
  }
  func.func @transform_1(%arg0: i32, %arg1: i32) -> (i32, i32) {
    %c0_i32 = arith.constant 0 : i32
    %c0_i32_0 = arith.constant 0 : i32
    return %c0_i32, %arg1 : i32, i32
  }
  func.func @transform_2(%arg0: i32, %arg1: i32) -> (i32, i32) {
    %c0_i32 = arith.constant 0 : i32
    %c0_i32_0 = arith.constant 0 : i32
    return %c0_i32, %arg1 : i32, i32
  }
  func.func @transform_3(%arg0: i32, %arg1: i32) -> (i32, i32) {
    %c0_i32 = arith.constant 0 : i32
    %c0_i32_0 = arith.constant 0 : i32
    return %arg1, %c0_i32 : i32, i32
  }
  func.func @transform_4(%arg0: i32, %arg1: i32) -> (i32, i32) {
    %c0_i32 = arith.constant 0 : i32
    %c0_i32_0 = arith.constant 0 : i32
    %c0_i32_1 = arith.constant 0 : i32
    return %c0_i32, %c0_i32_0 : i32, i32
  }
  func.func @transform_5(%arg0: i32, %arg1: i32) -> (i32, i32) {
    %c0_i32 = arith.constant 0 : i32
    %c0_i32_0 = arith.constant 0 : i32
    return %arg0, %c0_i32 : i32, i32
  }
}

</mosaic_0001>

<llo_original>
// kernel: tpu_custom_call.1
$region0: #{tpu_custom_call.1}
  #allocation0 [shape = 'u32[]', space=smem, size = 0x4, offset = 0x4, fixed_abs, tag = 'smem constant byte address 0x4 - core index']
  #allocation1 [shape = 'u32[144,128]{1,0:T(1,128)}', space=vmem, size = 0x12000, scoped, tag = 'internal scratch']
  #allocation2 [shape = 'f32[8,32]{1,0:T(8,128)}', space=vmem, size = 0x1000, scoped, tag = 'scratch operand']
  %s0 = inlined_call_operand.vmem [shape: bf16[16,32], index: 0, kind: input, shape index: {}]
  %s1 = inlined_call_operand.vmem [shape: bf16[32,128], index: 1, kind: input, shape index: {}]
  %s2 = inlined_call_operand.vmem [shape: f32[1,128], index: 2, kind: input, shape index: {}]
  %s3 = inlined_call_operand.vmem [shape: bf16[128,32], index: 3, kind: input, shape index: {}]
  %s4 = inlined_call_operand.vmem [shape: f32[1,32], index: 4, kind: input, shape index: {}]
  %s5 = inlined_call_operand.hbm [shape: f32[16,32], index: 5, kind: output, shape index: {}]
  %s6 = sld [smem:[#allocation0]]
  $region65: #{tpu_custom_call.1} parent=0
    _
  %s8 = ssub.s32 1, %s6
  %s9 = scalar_select 0, %s8, %s6
  $region1: #{tpu_custom_call.1} parent=0
    #allocation3 [shape = 'u8[8192]{0}', space=vmem, size = 0x2000, scoped, tag = 'output window, operand 0']
    #allocation4 [shape = 's32[2]{0}', space=sflag, size = 0x8, scoped, tag = 'scoped memory for tpu_custom_call.1']
    %10 = vsyncpa [#allocation4], 0
    %s11 = scalar_lea.sflag [#allocation4], 1
    %12 = vsyncpa %s11, 0
    loop: start=0, step=1, limit=4
    $region2: #{tpu_custom_call.1} parent=1 // loop_pre_header
      _
    $region3: #{tpu_custom_call.1} parent=1 // loop_header
      %s14 = sphi 0, %s18
      %p15 = scmp.ge.s32.totalorder %s14, 4
      %s21 = sphi 0, %s33
      %s22 = sphi 0, %s29
      %s23 = sphi 0, %s21
      %s24 = sphi 0, %s22
      %s25 = sphi 0, %s23
      %s26 = sphi 0, %s24
      %s36 = sphi 0, %s38
      %s39 = sphi 0, %s36
      %s40 = sphi 0, %s39
      %s56 = sphi 0, %s40
      %s62 = sphi 0, %s64
      %s65 = sphi 0, %s62
      %s66 = sphi 0, %s65
      %s82 = sphi 0, %s66
      %s88 = sphi 0, %s90
      %s91 = sphi 0, %s88
      %s92 = sphi 0, %s91
      %s108 = sphi 0, %s92
      %s114 = sphi 0, %s116
      %s117 = sphi 0, %s114
      %s118 = sphi 0, %s117
      %s134 = sphi 0, %s118
      %s138 = sphi 0, %s138
      %s140 = sphi 0, %s138
      %s141 = sphi 0, %s140
      %s155 = sphi 0, %s141
      %s161 = sphi 0, %s163
      %s164 = sphi 0, %s161
      %s165 = sphi 0, %s164
      %s181 = sphi 0, %s165
    $region4: #{tpu_custom_call.1} parent=1 // loop_header_branch
      %17 = sbr.rel (%p15) target = $region8
    $region5: #{tpu_custom_call.1} parent=1 // loop_body
      %s19 = ssub.s32 %s14, 1
      %s20 = ssub.s32 %s14, 2
      %s27 = sadd.s32 1, %s22
      %p28 = scmp.ge.s32.totalorder %s27, 1
      %s29 = scalar_select %p28, 0, %s27
      %s30 = sadd.s32 1, %s21
      %s31 = scalar_select %p28, %s30, %s21
      %p32 = scmp.ge.s32.totalorder %s31, 2
      %s33 = scalar_select %p32, 0, %s31
      %s34 = ssub.s32 %s21, %s33
      %p35 = scmp.eq.s32.totalorder %s34, 0
      %s37 = sadd.s32 %s36, 1
      %s38 = scalar_select %p35, %s36, %s37
      %p41 = pneg %p35
      %p42 = scmp.eq.s32.totalorder %s14, 1
      %p43 = por %p41, %p42
      %p44 = scmp.ne.s32.totalorder %s36, %s39
      %p45 = scmp.eq.s32.totalorder %s14, 0
      %p46 = por %p44, %p45
      %p47 = scmp.ne.s32.totalorder %s36, %s39
      %p48 = scmp.eq.s32.totalorder %s19, 1
      %p49 = por %p47, %p48
      %p50 = scmp.ne.s32.totalorder %s39, %s40
      %p51 = scmp.eq.s32.totalorder %s19, 0
      %p52 = por %p50, %p51
      %p53 = scmp.ne.s32.totalorder %s39, %s40
      %p54 = scmp.eq.s32.totalorder %s20, 1
      %p55 = por %p53, %p54
      %p57 = scmp.ne.s32.totalorder %s40, %s56
      %p58 = scmp.eq.s32.totalorder %s20, 0
      %p59 = por %p57, %p58
      %s60 = ssub.s32 %s22, %s29
      %p61 = scmp.eq.s32.totalorder %s60, 0
      %s63 = sadd.s32 %s62, 1
      %s64 = scalar_select %p61, %s62, %s63
      %p67 = pneg %p61
      %p68 = scmp.eq.s32.totalorder %s14, 1
      %p69 = por %p67, %p68
      %p70 = scmp.ne.s32.totalorder %s62, %s65
      %p71 = scmp.eq.s32.totalorder %s14, 0
      %p72 = por %p70, %p71
      %p73 = scmp.ne.s32.totalorder %s62, %s65
      %p74 = scmp.eq.s32.totalorder %s19, 1
      %p75 = por %p73, %p74
      %p76 = scmp.ne.s32.totalorder %s65, %s66
      %p77 = scmp.eq.s32.totalorder %s19, 0
      %p78 = por %p76, %p77
      %p79 = scmp.ne.s32.totalorder %s65, %s66
      %p80 = scmp.eq.s32.totalorder %s20, 1
      %p81 = por %p79, %p80
      %p83 = scmp.ne.s32.totalorder %s66, %s82
      %p84 = scmp.eq.s32.totalorder %s20, 0
      %p85 = por %p83, %p84
      %s86 = ssub.s32 %s22, %s29
      %p87 = scmp.eq.s32.totalorder %s86, 0
      %s89 = sadd.s32 %s88, 1
      %s90 = scalar_select %p87, %s88, %s89
      %p93 = pneg %p87
      %p94 = scmp.eq.s32.totalorder %s14, 1
      %p95 = por %p93, %p94
      %p96 = scmp.ne.s32.totalorder %s88, %s91
      %p97 = scmp.eq.s32.totalorder %s14, 0
      %p98 = por %p96, %p97
      %p99 = scmp.ne.s32.totalorder %s88, %s91
      %p100 = scmp.eq.s32.totalorder %s19, 1
      %p101 = por %p99, %p100
      %p102 = scmp.ne.s32.totalorder %s91, %s92
      %p103 = scmp.eq.s32.totalorder %s19, 0
      %p104 = por %p102, %p103
      %p105 = scmp.ne.s32.totalorder %s91, %s92
      %p106 = scmp.eq.s32.totalorder %s20, 1
      %p107 = por %p105, %p106
      %p109 = scmp.ne.s32.totalorder %s92, %s108
      %p110 = scmp.eq.s32.totalorder %s20, 0
      %p111 = por %p109, %p110
      %s112 = ssub.s32 %s22, %s29
      %p113 = scmp.eq.s32.totalorder %s112, 0
      %s115 = sadd.s32 %s114, 1
      %s116 = scalar_select %p113, %s114, %s115
      %p119 = pneg %p113
      %p120 = scmp.eq.s32.totalorder %s14, 1
      %p121 = por %p119, %p120
      %p122 = scmp.ne.s32.totalorder %s114, %s117
      %p123 = scmp.eq.s32.totalorder %s14, 0
      %p124 = por %p122, %p123
      %p125 = scmp.ne.s32.totalorder %s114, %s117
      %p126 = scmp.eq.s32.totalorder %s19, 1
      %p127 = por %p125, %p126
      %p128 = scmp.ne.s32.totalorder %s117, %s118
      %p129 = scmp.eq.s32.totalorder %s19, 0
      %p130 = por %p128, %p129
      %p131 = scmp.ne.s32.totalorder %s117, %s118
      %p132 = scmp.eq.s32.totalorder %s20, 1
      %p133 = por %p131, %p132
      %p135 = scmp.ne.s32.totalorder %s118, %s134
      %p136 = scmp.eq.s32.totalorder %s20, 0
      %p137 = por %p135, %p136
      %s139 = sadd.s32 %s138, 1
      %p142 = scmp.eq.s32.totalorder %s14, 1
      %p143 = scmp.ne.s32.totalorder %s138, %s140
      %p144 = scmp.eq.s32.totalorder %s14, 0
      %p145 = por %p143, %p144
      %p146 = scmp.ne.s32.totalorder %s138, %s140
      %p147 = scmp.eq.s32.totalorder %s19, 1
      %p148 = por %p146, %p147
      %p149 = scmp.ne.s32.totalorder %s140, %s141
      %p150 = scmp.eq.s32.totalorder %s19, 0
      %p151 = por %p149, %p150
      %p152 = scmp.ne.s32.totalorder %s140, %s141
      %p153 = scmp.eq.s32.totalorder %s20, 1
      %p154 = por %p152, %p153
      %p156 = scmp.ne.s32.totalorder %s141, %s155
      %p157 = scmp.eq.s32.totalorder %s20, 0
      %p158 = por %p156, %p157
      %s159 = ssub.s32 %s21, %s33
      %p160 = scmp.eq.s32.totalorder %s159, 0
      %s162 = sadd.s32 %s161, 1
      %s163 = scalar_select %p160, %s161, %s162
      %p166 = pneg %p160
      %p167 = scmp.eq.s32.totalorder %s14, 1
      %p168 = por %p166, %p167
      %p169 = scmp.ne.s32.totalorder %s161, %s164
      %p170 = scmp.eq.s32.totalorder %s14, 0
      %p171 = por %p169, %p170
      %p172 = scmp.ne.s32.totalorder %s161, %s164
      %p173 = scmp.eq.s32.totalorder %s19, 1
      %p174 = por %p172, %p173
      %p175 = scmp.ne.s32.totalorder %s164, %s165
      %p176 = scmp.eq.s32.totalorder %s19, 0
      %p177 = por %p175, %p176
      %p178 = scmp.ne.s32.totalorder %s164, %s165
      %p179 = scmp.eq.s32.totalorder %s20, 1
      %p180 = por %p178, %p179
      %p182 = scmp.ne.s32.totalorder %s165, %s181
      %p183 = scmp.eq.s32.totalorder %s20, 0
      %p184 = por %p182, %p183
      %p185 = scmp.le.s32.totalorder 1, %s14
      %p186 = scmp.lt.s32.totalorder %s14, 3
      %p187 = pnand %p185, %p186
      %p188 = pneg %p187
      // Predicated region
      $region9: #{tpu_custom_call.1} parent=5 // pred_check
        _
      $region10: #{tpu_custom_call.1} parent=5 // pred_check_branch
        %190 = sbr.rel (%p187) target = $region12
      $region11: #{tpu_custom_call.1} parent=5 // pred_region
        %s191 = ssub.s32 %s14, 1
        // Predicated region
        $region13: #{tpu_custom_call.1} parent=11 // pred_check
          %p192 = pneg %p78
        $region14: #{tpu_custom_call.1} parent=11 // pred_check_branch
          %194 = sbr.rel (%p192) target = $region16
        $region15: #{tpu_custom_call.1} parent=11 // pred_region
          %p195 = scmp.lt.s32.totalorder %s24, 0
          %s196 = scalar_select %p195, %s24, 0
          %s197 = smul.addr %s196, 4
          %s198 = scalar_lea.vmem %s1, %s197
        $region16: #{tpu_custom_call.1} parent=11 // pred_fallthru
          _
        // Predicated region
        $region17: #{tpu_custom_call.1} parent=11 // pred_check
          %p199 = pneg %p104
        $region18: #{tpu_custom_call.1} parent=11 // pred_check_branch
          %201 = sbr.rel (%p199) target = $region20
        $region19: #{tpu_custom_call.1} parent=11 // pred_region
          %p202 = scmp.lt.s32.totalorder %s24, 0
          %s203 = scalar_select %p202, %s24, 0
          %s204 = scalar_lea.vmem %s2, %s203
        $region20: #{tpu_custom_call.1} parent=11 // pred_fallthru
          _
        // Predicated region
        $region21: #{tpu_custom_call.1} parent=11 // pred_check
          %p205 = pneg %p130
        $region22: #{tpu_custom_call.1} parent=11 // pred_check_branch
          %207 = sbr.rel (%p205) target = $region24
        $region23: #{tpu_custom_call.1} parent=11 // pred_region
          %s208 = smul.u32 16, %s24
          %p209 = scmp.lt.s32.totalorder %s208, 15
          %s210 = scalar_select %p209, %s208, 15
          %s211 = smul.addr %s210, 4
          %s212 = scalar_lea.vmem %s3, %s211
          %s213 = smul.u32 16, %s24
        $region24: #{tpu_custom_call.1} parent=11 // pred_fallthru
          _
        // Predicated region
        $region25: #{tpu_custom_call.1} parent=11 // pred_check
          %p214 = pneg %p151
        $region26: #{tpu_custom_call.1} parent=11 // pred_check_branch
          %216 = sbr.rel (%p214) target = $region28
        $region27: #{tpu_custom_call.1} parent=11 // pred_region
          _
        $region28: #{tpu_custom_call.1} parent=11 // pred_fallthru
          _
      $region12: #{tpu_custom_call.1} parent=5 // pred_fallthru
        _
      %p217 = scmp.lt.s32.totalorder %s14, 2
      // Predicated region
      $region29: #{tpu_custom_call.1} parent=5 // pred_check
        %p218 = pneg %p217
      $region30: #{tpu_custom_call.1} parent=5 // pred_check_branch
        %220 = sbr.rel (%p218) target = $region32
      $region31: #{tpu_custom_call.1} parent=5 // pred_region
        // Predicated region
        $region33: #{tpu_custom_call.1} parent=31 // pred_check
          %p221 = pneg %p46
        $region34: #{tpu_custom_call.1} parent=31 // pred_check_branch
          %223 = sbr.rel (%p221) target = $region36
        $region35: #{tpu_custom_call.1} parent=31 // pred_region
          %p224 = scmp.lt.s32.totalorder %s21, 1
          %s225 = scalar_select %p224, %s21, 1
          %s226 = smul.addr %s225, 4
          %s227 = scalar_lea.vmem %s0, %s226
        $region36: #{tpu_custom_call.1} parent=31 // pred_fallthru
          _
      $region32: #{tpu_custom_call.1} parent=5 // pred_fallthru
        _
      %p228 = scmp.le.s32.totalorder 1, %s14
      %p229 = scmp.lt.s32.totalorder %s14, 3
      %p230 = pnand %p228, %p229
      %p231 = pneg %p230
      // Predicated region
      $region37: #{tpu_custom_call.1} parent=5 // pred_check
        _
      $region38: #{tpu_custom_call.1} parent=5 // pred_check_branch
        %233 = sbr.rel (%p230) target = $region40
      $region39: #{tpu_custom_call.1} parent=5 // pred_region
        %s234 = ssub.s32 %s14, 1
        %p235 = scmp.lt.s32.totalorder %s23, 1
        %s236 = scalar_select %p235, %s23, 1
        %s237 = smul.addr %s236, 4
        %s238 = scalar_lea.vmem %s0, %s237
        %p239 = pneg %p52
        %p240 = pneg %p49
        %p241 = scmp.lt.s32.totalorder %s24, 0
        %s242 = scalar_select %p241, %s24, 0
        %s243 = smul.addr %s242, 4
        %s244 = scalar_lea.vmem %s1, %s243
        %p245 = pneg %p78
        %p246 = pneg %p75
        %p247 = scmp.lt.s32.totalorder %s24, 0
        %s248 = scalar_select %p247, %s24, 0
        %s249 = scalar_lea.vmem %s2, %s248
        %p250 = pneg %p104
        %p251 = pneg %p101
        %s252 = smul.u32 16, %s24
        %p253 = scmp.lt.s32.totalorder %s252, 15
        %s254 = scalar_select %p253, %s252, 15
        %s255 = smul.addr %s254, 4
        %s256 = scalar_lea.vmem %s3, %s255
        %p257 = pneg %p130
        %p258 = pneg %p127
        %p259 = pneg %p151
        %p260 = pneg %p148
        %p261 = pneg %p177
        %p262 = pneg %p174
        %s263 = sand.u32 %s164, 1
        %s264 = scalar_lea.sflag [#allocation4], %s263
        %s265 = sand.u32 %s164, 1
        %s266 = smul.addr %s265, 8
        %s267 = scalar_lea.vmem [#allocation3], %s266
        %p268 = scmp.lt.s32.totalorder %s23, 1
        %s269 = scalar_select %p268, %s23, 1
        %s270 = smul.addr %s269, 4
        %s271 = scalar_lea.vmem %s0, %s270
        %p272 = scmp.lt.s32.totalorder %s24, 0
        %s273 = scalar_select %p272, %s24, 0
        %s274 = smul.addr %s273, 4
        %s275 = scalar_lea.vmem %s1, %s274
        %p276 = scmp.lt.s32.totalorder %s24, 0
        %s277 = scalar_select %p276, %s24, 0
        %s278 = scalar_lea.vmem %s2, %s277
        %s279 = smul.u32 16, %s24
        %p280 = scmp.lt.s32.totalorder %s279, 15
        %s281 = scalar_select %p280, %s279, 15
        %s282 = smul.addr %s281, 4
        %s283 = scalar_lea.vmem %s3, %s282
        %s284 = smul.u32 16, %s24
        %v286 = vld [vmem:[%s271] sm:$0xf]
        %v287 = vld [vmem:[%s275] sm:$0xf]
        %v288 = vld [vmem:[%s275 + $0x4] sm:$0xf]
        %v289 = vld [vmem:[%s275 + $0x8] sm:$0xf]
        %v290 = vld [vmem:[%s275 + $0xc] sm:$0xf]
        %v291 = vld [vmem:[%s278] sm:$0x1]
        %v293 = vlaneseq
        %v294 = vshrl.u32 %v293, 7
        %v295 = vsub.s32 0, %v294
        %v296 = vrot.slane %v291, %v295
        %v302 = vunpack.c.l.b16 %v287
        %v303 = vunpack.c.l.b16 %v288
        %v304 = vunpack.c.l.b16 %v289
        %v305 = vunpack.c.l.b16 %v290
        %v306 = vpack.c.b16 %v303, %v302
        %v307 = vpack.c.b16 %v305, %v304
        %vm310 = vcmask 261120
        %v312 = vsel %vm310, %v286, 0
        %314 = vmatprep.subr.bf16.mxu0 0
        %315 = vmatpush1.bf16.msra.mxu0 %v306
        %316 = vmatprep.subr.bf16.mxu0 0
        %317 = vmatpush1.bf16.msra.mxu0 %v307
        %318 = vmatprep.subr.bf16.mxu0 0
        %319 = vmatpush1.bf16.msra.mxu0 0
        %320 = vmatprep.subr.bf16.mxu0 0
        %321 = vmatpush1.bf16.msra.mxu0 0
        %322 = vmatprep.subr.bf16.mxu0 0
        %323 = vmatpush1.bf16.msra.mxu0 0
        %324 = vmatprep.subr.bf16.mxu0 0
        %325 = vmatpush1.bf16.msra.mxu0 0
        %326 = vmatprep.subr.bf16.mxu0 0
        %327 = vmatpush1.bf16.msra.mxu0 0
        %328 = vmatprep.subr.bf16.mxu0 0
        %329 = vmatpush1.bf16.msra.mxu0 0
        %330 = vmatprep.subr.bf16.mxu0 0
        %331 = vmatpush1.bf16.msra.mxu0 0
        %332 = vmatprep.subr.bf16.mxu0 0
        %333 = vmatpush1.bf16.msra.mxu0 0
        %334 = vmatprep.subr.bf16.mxu0 0
        %335 = vmatpush1.bf16.msra.mxu0 0
        %336 = vmatprep.subr.bf16.mxu0 0
        %337 = vmatpush1.bf16.msra.mxu0 0
        %338 = vmatprep.subr.bf16.mxu0 0
        %339 = vmatpush1.bf16.msra.mxu0 0
        %340 = vmatprep.subr.bf16.mxu0 0
        %341 = vmatpush1.bf16.msra.mxu0 0
        %342 = vmatprep.subr.bf16.mxu0 0
        %343 = vmatpush1.bf16.msra.mxu0 0
        %344 = vmatprep.subr.bf16.mxu0 0
        %345 = vmatpush1.bf16.msra.mxu0 0
        %346 = vmatprep.mubr.bf16.mxu0 0
        %347 = vmatmul.mubr.bf16.gmra.mrb[0].mxu0 %v312
        %v348 = vpop.f32.mrb[0].mxu0
        %v349 = vadd.f32 %v296, %v348
        %v350 = vpop.f32.mrb[0].mxu0
        %v351 = vpop.f32.mrb[0].mxu0
        %v352 = vpop.f32.mrb[0].mxu0
        %353 = vdwg.mxu0
        %v354 = vmul.f32 %v349, 0.5
        %v355 = vmul.f32 %v349, 0.7978846
        %v356 = vmul.f32 %v349, 0.044715
        %v357 = vmul.f32 %v356, %v349
        %v358 = vadd.f32 %v357, 1.0
        %v359 = vmul.f32 %v355, %v358
        %v360 = vtanh.pop %v359
        %v361 = vadd.f32 %v360, 1.0
        %v362 = vmul.f32 %v354, %v361
        %v363 = vpack.c.bf16 %v362, %v362
        %v364 = vld [vmem:[%s283] sm:$0xf]
        %v365 = vld [vmem:[%s283 + $0x4] sm:$0xf]
        %v366 = vld [vmem:[%s283 + $0x8] sm:$0xf]
        %v367 = vld [vmem:[%s283 + $0xc] sm:$0xf]
        %v368 = vld [vmem:[%s283 + $0x10] sm:$0xf]
        %v369 = vld [vmem:[%s283 + $0x14] sm:$0xf]
        %v370 = vld [vmem:[%s283 + $0x18] sm:$0xf]
        %v371 = vld [vmem:[%s283 + $0x1c] sm:$0xf]
        %v372 = vld [vmem:[%s283 + $0x20] sm:$0xf]
        %v373 = vld [vmem:[%s283 + $0x24] sm:$0xf]
        %v374 = vld [vmem:[%s283 + $0x28] sm:$0xf]
        %v375 = vld [vmem:[%s283 + $0x2c] sm:$0xf]
        %v376 = vld [vmem:[%s283 + $0x30] sm:$0xf]
        %v377 = vld [vmem:[%s283 + $0x34] sm:$0xf]
        %v378 = vld [vmem:[%s283 + $0x38] sm:$0xf]
        %v379 = vld [vmem:[%s283 + $0x3c] sm:$0xf]
        %v396 = vunpack.c.l.b16 %v364
        %v397 = vunpack.c.l.b16 %v365
        %v398 = vunpack.c.l.b16 %v366
        %v399 = vunpack.c.l.b16 %v367
        %v400 = vunpack.c.l.b16 %v368
        %v401 = vunpack.c.l.b16 %v369
        %v402 = vunpack.c.l.b16 %v370
        %v403 = vunpack.c.l.b16 %v371
        %v404 = vunpack.c.l.b16 %v372
        %v405 = vunpack.c.l.b16 %v373
        %v406 = vunpack.c.l.b16 %v374
        %v407 = vunpack.c.l.b16 %v375
        %v408 = vunpack.c.l.b16 %v376
        %v409 = vunpack.c.l.b16 %v377
        %v410 = vunpack.c.l.b16 %v378
        %v411 = vunpack.c.l.b16 %v379
        %v412 = vpack.c.b16 %v397, %v396
        %v413 = vpack.c.b16 %v399, %v398
        %v414 = vpack.c.b16 %v401, %v400
        %v415 = vpack.c.b16 %v403, %v402
        %v416 = vpack.c.b16 %v405, %v404
        %v417 = vpack.c.b16 %v407, %v406
        %v418 = vpack.c.b16 %v409, %v408
        %v419 = vpack.c.b16 %v411, %v410
        %428 = vmatprep.subr.bf16.mxu0 0
        %429 = vmatpush1.bf16.msra.mxu0 %v412
        %430 = vmatprep.subr.bf16.mxu0 0
        %431 = vmatpush1.bf16.msra.mxu0 %v413
        %432 = vmatprep.subr.bf16.mxu0 0
        %433 = vmatpush1.bf16.msra.mxu0 %v414
        %434 = vmatprep.subr.bf16.mxu0 0
        %435 = vmatpush1.bf16.msra.mxu0 %v415
        %436 = vmatprep.subr.bf16.mxu0 0
        %437 = vmatpush1.bf16.msra.mxu0 %v416
        %438 = vmatprep.subr.bf16.mxu0 0
        %439 = vmatpush1.bf16.msra.mxu0 %v417
        %440 = vmatprep.subr.bf16.mxu0 0
        %441 = vmatpush1.bf16.msra.mxu0 %v418
        %442 = vmatprep.subr.bf16.mxu0 0
        %443 = vmatpush1.bf16.msra.mxu0 %v419
        %444 = vmatprep.subr.bf16.mxu0 0
        %445 = vmatpush1.bf16.msra.mxu0 0
        %446 = vmatprep.subr.bf16.mxu0 0
        %447 = vmatpush1.bf16.msra.mxu0 0
        %448 = vmatprep.subr.bf16.mxu0 0
        %449 = vmatpush1.bf16.msra.mxu0 0
        %450 = vmatprep.subr.bf16.mxu0 0
        %451 = vmatpush1.bf16.msra.mxu0 0
        %452 = vmatprep.subr.bf16.mxu0 0
        %453 = vmatpush1.bf16.msra.mxu0 0
        %454 = vmatprep.subr.bf16.mxu0 0
        %455 = vmatpush1.bf16.msra.mxu0 0
        %456 = vmatprep.subr.bf16.mxu0 0
        %457 = vmatpush1.bf16.msra.mxu0 0
        %458 = vmatprep.subr.bf16.mxu0 0
        %459 = vmatpush1.bf16.msra.mxu0 0
        %460 = vmatprep.mubr.bf16.mxu0 0
        %461 = vmatmul.mubr.bf16.gmra.mrb[0].mxu0 %v363
        %v462 = vpop.f32.mrb[0].mxu0
        %v463 = vadd.f32 0.0, %v462
        %v464 = vpop.f32.mrb[0].mxu0
        %v465 = vpop.f32.mrb[0].mxu0
        %v466 = vpop.f32.mrb[0].mxu0
        %467 = vdwg.mxu0
        %p468 = scmp.eq.s32.totalorder %s24, 0
        // Predicated region
        $region41: #{tpu_custom_call.1} parent=39 // pred_check
          %p469 = pneg %p468
        $region42: #{tpu_custom_call.1} parent=39 // pred_check_branch
          %471 = sbr.rel (%p469) target = $region44
        $region43: #{tpu_custom_call.1} parent=39 // pred_region
          %472 = vst.msk [vmem:[#allocation2] sm:$0xff] %vm310, %v463
        $region44: #{tpu_custom_call.1} parent=39 // pred_fallthru
          _
        %p473 = scmp.gt.s32.totalorder %s24, 0
        // Predicated region
        $region45: #{tpu_custom_call.1} parent=39 // pred_check
          %p474 = pneg %p473
        $region46: #{tpu_custom_call.1} parent=39 // pred_check_branch
          %476 = sbr.rel (%p474) target = $region48
        $region47: #{tpu_custom_call.1} parent=39 // pred_region
          %v477 = vld [vmem:[#allocation2] sm:$0xff]
          %v478 = vadd.f32 %v477, %v463
          %479 = vst.msk [vmem:[#allocation2] sm:$0xff] %vm310, %v478
        $region48: #{tpu_custom_call.1} parent=39 // pred_fallthru
          _
        // Predicated region
        $region49: #{tpu_custom_call.1} parent=39 // pred_check
          %p480 = pneg %p468
        $region50: #{tpu_custom_call.1} parent=39 // pred_check_branch
          %482 = sbr.rel (%p480) target = $region52
        $region51: #{tpu_custom_call.1} parent=39 // pred_region
          %v483 = vld [vmem:[#allocation2] sm:$0xff]
          %v484 = vld [vmem:[%s4] sm:$0x1]
          %v486 = vlaneseq
          %v487 = vshrl.u32 %v486, 7
          %v488 = vsub.s32 0, %v487
          %v489 = vrot.slane %v484, %v488
          %v491 = vadd.f32 %v483, %v489
          %492 = vst.msk [vmem:[%s267] sm:$0xff] %vm310, %v491
        $region52: #{tpu_custom_call.1} parent=39 // pred_fallthru
          _
        %s493 = sand.u32 %s164, 1
        %s494 = scalar_lea.sflag [#allocation4], %s493
        %s495 = sand.u32 %s164, 1
        %s496 = smul.addr %s495, 8
        %s497 = scalar_lea.vmem [#allocation3], %s496
        // Predicated region
        $region53: #{tpu_custom_call.1} parent=39 // pred_check
          %p498 = pneg %p174
        $region54: #{tpu_custom_call.1} parent=39 // pred_check_branch
          %500 = sbr.rel (%p498) target = $region56
        $region55: #{tpu_custom_call.1} parent=39 // pred_region
          %s502 = ssub.s32 128, 128
          %503 = vsyncadd %s494, %s502
          %s504 = smul.addr %s23, 128
          %s505 = scalar_lea.hbm %s5, %s504
          %s507 = sshll.u32 %s497, 4
          %s508 = int_to_ptr.vmem [resolvable:$true] %s507
          %510 = dma.vmem_to_hbm [thread:$0]  %s508, 128, %s505, %s494
        $region56: #{tpu_custom_call.1} parent=39 // pred_fallthru
          _
      $region40: #{tpu_custom_call.1} parent=5 // pred_fallthru
        _
      %p511 = scmp.le.s32.totalorder 2, %s14
      // Predicated region
      $region57: #{tpu_custom_call.1} parent=5 // pred_check
        %p512 = pneg %p511
      $region58: #{tpu_custom_call.1} parent=5 // pred_check_branch
        %514 = sbr.rel (%p512) target = $region60
      $region59: #{tpu_custom_call.1} parent=5 // pred_region
        %s515 = ssub.s32 %s14, 2
        // Predicated region
        $region61: #{tpu_custom_call.1} parent=59 // pred_check
          %p516 = pneg %p180
        $region62: #{tpu_custom_call.1} parent=59 // pred_check_branch
          %518 = sbr.rel (%p516) target = $region64
        $region63: #{tpu_custom_call.1} parent=59 // pred_region
          %s519 = sand.u32 %s165, 1
          %s520 = scalar_lea.sflag [#allocation4], %s519
          %s521 = sand.u32 %s165, 1
          %s522 = smul.addr %s521, 8
          %s523 = scalar_lea.vmem [#allocation3], %s522
          %524 = dma.done %s520, 128
        $region64: #{tpu_custom_call.1} parent=59 // pred_fallthru
          _
      $region60: #{tpu_custom_call.1} parent=5 // pred_fallthru
        _
    $region6: #{tpu_custom_call.1} parent=1 // loop_footer
      %s18 = sadd.s32 1, %s14
    $region7: #{tpu_custom_call.1} parent=1 // loop_footer_branch
      %13 = sbr.rel target = $region3
    $region8: #{tpu_custom_call.1} parent=1 // loop_exit
      _
    %525 = vsyncpa [#allocation4], 1
    %s526 = scalar_lea.sflag [#allocation4], 1
    %527 = vsyncpa %s526, 1

</llo_original>
